<compile_context>
chip_gen: v7x
topology: tpu7x:2x2x1
jax: 0.10.0
libtpu: 0.0.40
codegen_flags: <defaults>
</compile_context>

<pallas_src>
import jax
import jax.numpy as jnp
from jax.experimental import pallas as pl
from jax.experimental.pallas import tpu as pltpu

INPUT_DIM = 6
OUTPUT_DIM = 4
HIDDEN_DIM = 64
NUM_LAYERS = 3  # -> layers: in->h, (num_layers-1) x h->h, h->out

_LANE = 128          # lane-axis granularity (batch tiles must be a multiple of this)
_TARGET_TILE = 2048  # batch rows per grid step at large B


def _round_up(n, m):
    return ((n + m - 1) // m) * m


def _mlp_kernel(x_ref,
                w0_ref, b0_ref,
                w1_ref, b1_ref,
                w2_ref, b2_ref,
                w3_ref, b3_ref,
                o_ref):
    # Feature-major: x_ref is (INPUT_DIM, tile), weights are (out, in), so every layer is
    # W @ h with the batch (tile) on the MXU N-dim / lane axis.
    # Dots use bf16 operands + f32 accumulation; bias-add / ReLU stay in f32.
    h = jnp.dot(w0_ref[...], x_ref[...], preferred_element_type=jnp.float32) + b0_ref[...]
    h = jnp.maximum(h, 0.0)
    h = jnp.dot(w1_ref[...], h.astype(jnp.bfloat16),
                preferred_element_type=jnp.float32) + b1_ref[...]
    h = jnp.maximum(h, 0.0)
    h = jnp.dot(w2_ref[...], h.astype(jnp.bfloat16),
                preferred_element_type=jnp.float32) + b2_ref[...]
    h = jnp.maximum(h, 0.0)
    out = jnp.dot(w3_ref[...], h.astype(jnp.bfloat16),
                  preferred_element_type=jnp.float32) + b3_ref[...]
    o_ref[...] = out.astype(o_ref.dtype)


@jax.jit
def residual_net_forward(x, params):
    """x: (B, INPUT_DIM) float32. params: list of (W, b) with W in PyTorch layout (out, in)."""
    B, in_dim = x.shape
    assert in_dim == INPUT_DIM

    (w0, b0), (w1, b1), (w2, b2), (w3, b3) = params

    # --- choose batch tile (static; shapes are known at trace time) -------------------------
    # Multiple of 128 (lane axis), capped at ~ceil(B/2) so large batches give >= 2 balanced
    # grid steps (v7x megacore), capped at _TARGET_TILE to bound VMEM / keep pipelining.
    tile = min(_TARGET_TILE, _round_up(pl.cdiv(B, 2), _LANE))
    tile = max(tile, _LANE)
    b_pad = _round_up(B, tile)
    grid = (b_pad // tile,)

    # --- one-time wrapper-side transpose / casts / padding (hoisted out of the kernel) ------
    x_t = x.T.astype(jnp.bfloat16)                     # (INPUT_DIM, B), batch on lanes
    if b_pad != B:
        x_t = jnp.pad(x_t, ((0, 0), (0, b_pad - B)))
    w0b, w1b, w2b, w3b = (w.astype(jnp.bfloat16) for w in (w0, w1, w2, w3))
    # Biases as (out, 1) f32 columns so they broadcast against (out, tile) inside the kernel.
    b0c, b1c, b2c, b3c = (b.reshape(-1, 1).astype(jnp.float32) for b in (b0, b1, b2, b3))

    # --- specs -------------------------------------------------------------------------------
    x_spec = pl.BlockSpec((INPUT_DIM, tile), lambda i: (0, i))
    out_spec = pl.BlockSpec((OUTPUT_DIM, tile), lambda i: (0, i))
    # Full-array blocks with a constant index_map: Pallas keeps these resident in VMEM and
    # never re-DMAs them across grid steps.
    full = lambda arr: pl.BlockSpec(arr.shape, lambda i: (0, 0))

    # --- cost hint for XLA's scheduler -------------------------------------------------------
    flops_per_row = 2 * (INPUT_DIM * HIDDEN_DIM
                         + (NUM_LAYERS - 1) * HIDDEN_DIM * HIDDEN_DIM
                         + HIDDEN_DIM * OUTPUT_DIM)
    param_bytes = sum(int(a.size) * a.dtype.itemsize
                      for a in (w0b, w1b, w2b, w3b, b0c, b1c, b2c, b3c))
    cost = pl.CostEstimate(
        flops=b_pad * flops_per_row,
        transcendentals=0,
        bytes_accessed=b_pad * (INPUT_DIM * 2 + OUTPUT_DIM * 4) + param_bytes,
    )

    out_t = pl.pallas_call(
        _mlp_kernel,
        out_shape=jax.ShapeDtypeStruct((OUTPUT_DIM, b_pad), jnp.float32),
        grid_spec=pltpu.PrefetchScalarGridSpec(
            num_scalar_prefetch=0,
            grid=grid,
            in_specs=[
                x_spec,
                full(w0b), full(b0c),
                full(w1b), full(b1c),
                full(w2b), full(b2c),
                full(w3b), full(b3c),
            ],
            out_specs=out_spec,
        ),
        compiler_params=pltpu.CompilerParams(
            dimension_semantics=("parallel",)),
        cost_estimate=cost,
    )(x_t, w0b, b0c, w1b, b1c, w2b, b2c, w3b, b3c)

    # Back to (B, OUTPUT_DIM) to match the PyTorch module's output convention.
    return out_t[:, :B].T


def init_params(key):
    """Deterministic init matching PyTorch nn.Linear default: U(-1/sqrt(fan_in), +1/sqrt(fan_in)).
    Weights stored in PyTorch layout (out_features, in_features)."""
    dims = [(INPUT_DIM, HIDDEN_DIM)]
    for _ in range(NUM_LAYERS - 1):
        dims.append((HIDDEN_DIM, HIDDEN_DIM))
    dims.append((HIDDEN_DIM, OUTPUT_DIM))

    params = []
    for (fan_in, fan_out) in dims:
        key, kw, kb = jax.random.split(key, 3)
        bound = 1.0 / jnp.sqrt(fan_in)
        w = jax.random.uniform(kw, (fan_out, fan_in), jnp.float32, -bound, bound)
        b = jax.random.uniform(kb, (fan_out,), jnp.float32, -bound, bound)
        params.append((w, b))
    return params


def reference_forward(x, params):
    """Pure-JAX f32 reference (same semantics as the PyTorch module)."""
    h = x
    for i, (w, b) in enumerate(params):
        h = h @ w.T + b
        if i < len(params) - 1:
            h = jnp.maximum(h, 0.0)
    return h


if __name__ == "__main__":
    key = jax.random.PRNGKey(0)
    key, kx = jax.random.split(key)

    # Small batch; deliberately NOT a multiple of the tile to exercise the padding path.
    B = 20
    x = jax.random.normal(kx, (B, INPUT_DIM), jnp.float32)
    params = init_params(key)

    out = jax.block_until_ready(residual_net_forward(x, params))
    ref = reference_forward(x, params)

    assert out.shape == (B, OUTPUT_DIM)
    # bf16 MXU operands with f32 accumulation -> loosened tolerance vs. the f32 reference.
    assert jnp.allclose(out, ref, atol=5e-2, rtol=5e-2), "mismatch vs reference"

    print("KERNEL_OK")
</pallas_src>

<mosaic_0001>
module attributes {stable_mosaic.version = 11 : i64} {
  func.func @_mlp_kernel(%arg0: i32, %arg1: memref<6x128xbf16, #tpu.memory_space<vmem>>, %arg2: memref<64x6xbf16, #tpu.memory_space<vmem>>, %arg3: memref<64x1xf32, #tpu.memory_space<vmem>>, %arg4: memref<64x64xbf16, #tpu.memory_space<vmem>>, %arg5: memref<64x1xf32, #tpu.memory_space<vmem>>, %arg6: memref<64x64xbf16, #tpu.memory_space<vmem>>, %arg7: memref<64x1xf32, #tpu.memory_space<vmem>>, %arg8: memref<4x64xbf16, #tpu.memory_space<vmem>>, %arg9: memref<4x1xf32, #tpu.memory_space<vmem>>, %arg10: memref<4x128xf32, #tpu.memory_space<vmem>>) attributes {dimension_semantics = [#tpu.dimension_semantics<parallel>], iteration_bounds = array<i64: 1>, scalar_prefetch = 0 : i64, scratch_operands = 0 : i64, tpu.core_type = #tpu.core_type<tc>, window_params = [{transform_indices = @transform_0, window_bounds = array<i64: 6, 128>}, {pipeline_mode = #tpu.pipeline_mode<synchronous>, transform_indices = @transform_1, window_bounds = array<i64: 64, 6>}, {pipeline_mode = #tpu.pipeline_mode<synchronous>, transform_indices = @transform_2, window_bounds = array<i64: 64, 1>}, {pipeline_mode = #tpu.pipeline_mode<synchronous>, transform_indices = @transform_3, window_bounds = array<i64: 64, 64>}, {pipeline_mode = #tpu.pipeline_mode<synchronous>, transform_indices = @transform_4, window_bounds = array<i64: 64, 1>}, {pipeline_mode = #tpu.pipeline_mode<synchronous>, transform_indices = @transform_5, window_bounds = array<i64: 64, 64>}, {pipeline_mode = #tpu.pipeline_mode<synchronous>, transform_indices = @transform_6, window_bounds = array<i64: 64, 1>}, {pipeline_mode = #tpu.pipeline_mode<synchronous>, transform_indices = @transform_7, window_bounds = array<i64: 4, 64>}, {pipeline_mode = #tpu.pipeline_mode<synchronous>, transform_indices = @transform_8, window_bounds = array<i64: 4, 1>}, {transform_indices = @transform_9, window_bounds = array<i64: 4, 128>}]} {
    %c0 = arith.constant 0 : index
    %c0_0 = arith.constant 0 : index
    %0 = vector.load %arg2[%c0, %c0_0] : memref<64x6xbf16, #tpu.memory_space<vmem>>, vector<64x6xbf16>
    %c0_1 = arith.constant 0 : index
    %c0_2 = arith.constant 0 : index
    %1 = vector.load %arg1[%c0_1, %c0_2] : memref<6x128xbf16, #tpu.memory_space<vmem>>, vector<6x128xbf16>
    %cst = arith.constant dense<0.000000e+00> : vector<64x128xf32>
    %2 = tpu.matmul %0, %1, %cst {dimension_numbers = #tpu.dot_dimension_numbers<[1], [0], [0], [1], [0, 0, 1, 1], [], []>} : vector<64x6xbf16>, vector<6x128xbf16>, vector<64x128xf32> -> vector<64x128xf32>
    %c0_3 = arith.constant 0 : index
    %c0_4 = arith.constant 0 : index
    %3 = vector.load %arg3[%c0_3, %c0_4] : memref<64x1xf32, #tpu.memory_space<vmem>>, vector<64x1xf32>
    %4 = vector.broadcast %3 : vector<64x1xf32> to vector<64x128xf32>
    %5 = arith.addf %2, %4 : vector<64x128xf32>
    %cst_5 = arith.constant 0.000000e+00 : f32
    %6 = vector.broadcast %cst_5 : f32 to vector<64x128xf32>
    %7 = arith.maximumf %5, %6 : vector<64x128xf32>
    %c0_6 = arith.constant 0 : index
    %c0_7 = arith.constant 0 : index
    %8 = vector.load %arg4[%c0_6, %c0_7] : memref<64x64xbf16, #tpu.memory_space<vmem>>, vector<64x64xbf16>
    %9 = arith.truncf %7 : vector<64x128xf32> to vector<64x128xbf16>
    %cst_8 = arith.constant dense<0.000000e+00> : vector<64x128xf32>
    %10 = tpu.matmul %8, %9, %cst_8 {dimension_numbers = #tpu.dot_dimension_numbers<[1], [0], [0], [1], [0, 0, 1, 1], [], []>} : vector<64x64xbf16>, vector<64x128xbf16>, vector<64x128xf32> -> vector<64x128xf32>
    %c0_9 = arith.constant 0 : index
    %c0_10 = arith.constant 0 : index
    %11 = vector.load %arg5[%c0_9, %c0_10] : memref<64x1xf32, #tpu.memory_space<vmem>>, vector<64x1xf32>
    %12 = vector.broadcast %11 : vector<64x1xf32> to vector<64x128xf32>
    %13 = arith.addf %10, %12 : vector<64x128xf32>
    %cst_11 = arith.constant 0.000000e+00 : f32
    %14 = vector.broadcast %cst_11 : f32 to vector<64x128xf32>
    %15 = arith.maximumf %13, %14 : vector<64x128xf32>
    %c0_12 = arith.constant 0 : index
    %c0_13 = arith.constant 0 : index
    %16 = vector.load %arg6[%c0_12, %c0_13] : memref<64x64xbf16, #tpu.memory_space<vmem>>, vector<64x64xbf16>
    %17 = arith.truncf %15 : vector<64x128xf32> to vector<64x128xbf16>
    %cst_14 = arith.constant dense<0.000000e+00> : vector<64x128xf32>
    %18 = tpu.matmul %16, %17, %cst_14 {dimension_numbers = #tpu.dot_dimension_numbers<[1], [0], [0], [1], [0, 0, 1, 1], [], []>} : vector<64x64xbf16>, vector<64x128xbf16>, vector<64x128xf32> -> vector<64x128xf32>
    %c0_15 = arith.constant 0 : index
    %c0_16 = arith.constant 0 : index
    %19 = vector.load %arg7[%c0_15, %c0_16] : memref<64x1xf32, #tpu.memory_space<vmem>>, vector<64x1xf32>
    %20 = vector.broadcast %19 : vector<64x1xf32> to vector<64x128xf32>
    %21 = arith.addf %18, %20 : vector<64x128xf32>
    %cst_17 = arith.constant 0.000000e+00 : f32
    %22 = vector.broadcast %cst_17 : f32 to vector<64x128xf32>
    %23 = arith.maximumf %21, %22 : vector<64x128xf32>
    %c0_18 = arith.constant 0 : index
    %c0_19 = arith.constant 0 : index
    %24 = vector.load %arg8[%c0_18, %c0_19] : memref<4x64xbf16, #tpu.memory_space<vmem>>, vector<4x64xbf16>
    %25 = arith.truncf %23 : vector<64x128xf32> to vector<64x128xbf16>
    %cst_20 = arith.constant dense<0.000000e+00> : vector<4x128xf32>
    %26 = tpu.matmul %24, %25, %cst_20 {dimension_numbers = #tpu.dot_dimension_numbers<[1], [0], [0], [1], [0, 0, 1, 1], [], []>} : vector<4x64xbf16>, vector<64x128xbf16>, vector<4x128xf32> -> vector<4x128xf32>
    %c0_21 = arith.constant 0 : index
    %c0_22 = arith.constant 0 : index
    %27 = vector.load %arg9[%c0_21, %c0_22] : memref<4x1xf32, #tpu.memory_space<vmem>>, vector<4x1xf32>
    %28 = vector.broadcast %27 : vector<4x1xf32> to vector<4x128xf32>
    %29 = arith.addf %26, %28 : vector<4x128xf32>
    %c0_23 = arith.constant 0 : index
    %c0_24 = arith.constant 0 : index
    %30 = vector.load %arg10[%c0_23, %c0_24] : memref<4x128xf32, #tpu.memory_space<vmem>>, vector<4x128xf32>
    tpu.vector_store %arg10[%c0_23, %c0_24], %29 {strides = array<i32>} : memref<4x128xf32, #tpu.memory_space<vmem>>, vector<4x128xf32>,
    return
  }
  func.func @transform_0(%arg0: i32) -> (i32, i32) {
    %c0_i32 = arith.constant 0 : i32
    %c0_i32_0 = arith.constant 0 : i32
    return %c0_i32, %arg0 : i32, i32
  }
  func.func @transform_1(%arg0: i32) -> (i32, i32) {
    %c0_i32 = arith.constant 0 : i32
    %c0_i32_0 = arith.constant 0 : i32
    %c0_i32_1 = arith.constant 0 : i32
    return %c0_i32, %c0_i32_0 : i32, i32
  }
  func.func @transform_2(%arg0: i32) -> (i32, i32) {
    %c0_i32 = arith.constant 0 : i32
    %c0_i32_0 = arith.constant 0 : i32
    %c0_i32_1 = arith.constant 0 : i32
    return %c0_i32, %c0_i32_0 : i32, i32
  }
  func.func @transform_3(%arg0: i32) -> (i32, i32) {
    %c0_i32 = arith.constant 0 : i32
    %c0_i32_0 = arith.constant 0 : i32
    %c0_i32_1 = arith.constant 0 : i32
    return %c0_i32, %c0_i32_0 : i32, i32
  }
  func.func @transform_4(%arg0: i32) -> (i32, i32) {
    %c0_i32 = arith.constant 0 : i32
    %c0_i32_0 = arith.constant 0 : i32
    %c0_i32_1 = arith.constant 0 : i32
    return %c0_i32, %c0_i32_0 : i32, i32
  }
  func.func @transform_5(%arg0: i32) -> (i32, i32) {
    %c0_i32 = arith.constant 0 : i32
    %c0_i32_0 = arith.constant 0 : i32
    %c0_i32_1 = arith.constant 0 : i32
    return %c0_i32, %c0_i32_0 : i32, i32
  }
  func.func @transform_6(%arg0: i32) -> (i32, i32) {
    %c0_i32 = arith.constant 0 : i32
    %c0_i32_0 = arith.constant 0 : i32
    %c0_i32_1 = arith.constant 0 : i32
    return %c0_i32, %c0_i32_0 : i32, i32
  }
  func.func @transform_7(%arg0: i32) -> (i32, i32) {
    %c0_i32 = arith.constant 0 : i32
    %c0_i32_0 = arith.constant 0 : i32
    %c0_i32_1 = arith.constant 0 : i32
    return %c0_i32, %c0_i32_0 : i32, i32
  }
  func.func @transform_8(%arg0: i32) -> (i32, i32) {
    %c0_i32 = arith.constant 0 : i32
    %c0_i32_0 = arith.constant 0 : i32
    %c0_i32_1 = arith.constant 0 : i32
    return %c0_i32, %c0_i32_0 : i32, i32
  }
  func.func @transform_9(%arg0: i32) -> (i32, i32) {
    %c0_i32 = arith.constant 0 : i32
    %c0_i32_0 = arith.constant 0 : i32
    return %c0_i32, %arg0 : i32, i32
  }
}

</mosaic_0001>

<llo_original>
// kernel: residual_net_forward.1
$region0: #{residual_net_forward.1}
  #allocation0 [shape = 'u32[]', space=smem, size = 0x4, offset = 0x4, fixed_abs, tag = 'smem constant byte address 0x4 - core index']
  #allocation1 [shape = 'u32[144,128]{1,0:T(1,128)}', space=vmem, size = 0x12000, scoped, tag = 'internal scratch']
  %s0 = inlined_call_operand.vmem [shape: bf16[6,128], index: 0, kind: input, shape index: {}]
  %s1 = inlined_call_operand.vmem [shape: bf16[64,6], index: 1, kind: input, shape index: {}]
  %s2 = inlined_call_operand.vmem [shape: f32[64,1], index: 2, kind: input, shape index: {}]
  %s3 = inlined_call_operand.vmem [shape: bf16[64,64], index: 3, kind: input, shape index: {}]
  %s4 = inlined_call_operand.vmem [shape: f32[64,1], index: 4, kind: input, shape index: {}]
  %s5 = inlined_call_operand.vmem [shape: bf16[64,64], index: 5, kind: input, shape index: {}]
  %s6 = inlined_call_operand.vmem [shape: f32[64,1], index: 6, kind: input, shape index: {}]
  %s7 = inlined_call_operand.vmem [shape: bf16[4,64], index: 7, kind: input, shape index: {}]
  %s8 = inlined_call_operand.vmem [shape: f32[4,1], index: 8, kind: input, shape index: {}]
  %s9 = inlined_call_operand.vmem [shape: f32[4,128], index: 9, kind: output, shape index: {}]
  %s10 = sld [smem:[#allocation0]]
  $region46: #{residual_net_forward.1} parent=0
    _
  %s12 = ssub.s32 1, %s10
  %s13 = scalar_select 0, %s12, %s10
  // Predicated region
  $region2: #{residual_net_forward.1} parent=0 // pred_check
    _
  $region3: #{residual_net_forward.1} parent=0 // pred_check_branch
    %15 = sbr.rel (0) target = $region5
  $region4: #{residual_net_forward.1} parent=0 // pred_region
    _
  $region5: #{residual_net_forward.1} parent=0 // pred_fallthru
    _
  // Predicated region
  $region6: #{residual_net_forward.1} parent=0 // pred_check
    _
  $region7: #{residual_net_forward.1} parent=0 // pred_check_branch
    %17 = sbr.rel (0) target = $region9
  $region8: #{residual_net_forward.1} parent=0 // pred_region
    _
  $region9: #{residual_net_forward.1} parent=0 // pred_fallthru
    _
  // Predicated region
  $region10: #{residual_net_forward.1} parent=0 // pred_check
    _
  $region11: #{residual_net_forward.1} parent=0 // pred_check_branch
    %19 = sbr.rel (0) target = $region13
  $region12: #{residual_net_forward.1} parent=0 // pred_region
    _
  $region13: #{residual_net_forward.1} parent=0 // pred_fallthru
    _
  // Predicated region
  $region14: #{residual_net_forward.1} parent=0 // pred_check
    _
  $region15: #{residual_net_forward.1} parent=0 // pred_check_branch
    %21 = sbr.rel (0) target = $region17
  $region16: #{residual_net_forward.1} parent=0 // pred_region
    _
  $region17: #{residual_net_forward.1} parent=0 // pred_fallthru
    _
  // Predicated region
  $region18: #{residual_net_forward.1} parent=0 // pred_check
    _
  $region19: #{residual_net_forward.1} parent=0 // pred_check_branch
    %23 = sbr.rel (0) target = $region21
  $region20: #{residual_net_forward.1} parent=0 // pred_region
    _
  $region21: #{residual_net_forward.1} parent=0 // pred_fallthru
    _
  // Predicated region
  $region22: #{residual_net_forward.1} parent=0 // pred_check
    _
  $region23: #{residual_net_forward.1} parent=0 // pred_check_branch
    %25 = sbr.rel (0) target = $region25
  $region24: #{residual_net_forward.1} parent=0 // pred_region
    _
  $region25: #{residual_net_forward.1} parent=0 // pred_fallthru
    _
  // Predicated region
  $region26: #{residual_net_forward.1} parent=0 // pred_check
    _
  $region27: #{residual_net_forward.1} parent=0 // pred_check_branch
    %27 = sbr.rel (0) target = $region29
  $region28: #{residual_net_forward.1} parent=0 // pred_region
    _
  $region29: #{residual_net_forward.1} parent=0 // pred_fallthru
    _
  // Predicated region
  $region30: #{residual_net_forward.1} parent=0 // pred_check
    _
  $region31: #{residual_net_forward.1} parent=0 // pred_check_branch
    %29 = sbr.rel (0) target = $region33
  $region32: #{residual_net_forward.1} parent=0 // pred_region
    _
  $region33: #{residual_net_forward.1} parent=0 // pred_fallthru
    _
  // Predicated region
  $region34: #{residual_net_forward.1} parent=0 // pred_check
    _
  $region35: #{residual_net_forward.1} parent=0 // pred_check_branch
    %31 = sbr.rel (0) target = $region37
  $region36: #{residual_net_forward.1} parent=0 // pred_region
    _
  $region37: #{residual_net_forward.1} parent=0 // pred_fallthru
    _
  %v33 = vld [vmem:[%s1] sm:$0xf]
  %v34 = vld [vmem:[%s1 + $0x4] sm:$0xf]
  %v35 = vld [vmem:[%s1 + $0x8] sm:$0xf]
  %v36 = vld [vmem:[%s1 + $0xc] sm:$0xf]
  %v37 = vld [vmem:[%s1 + $0x10] sm:$0xf]
  %v38 = vld [vmem:[%s1 + $0x14] sm:$0xf]
  %v39 = vld [vmem:[%s1 + $0x18] sm:$0xf]
  %v40 = vld [vmem:[%s1 + $0x1c] sm:$0xf]
  %v41 = vld [vmem:[%s0] sm:$0x7]
  %v42 = vld [vmem:[%s2] sm:$0xff]
  %v43 = vld [vmem:[%s2 + $0x8] sm:$0xff]
  %v44 = vld [vmem:[%s2 + $0x10] sm:$0xff]
  %v45 = vld [vmem:[%s2 + $0x18] sm:$0xff]
  %v46 = vld [vmem:[%s2 + $0x20] sm:$0xff]
  %v47 = vld [vmem:[%s2 + $0x28] sm:$0xff]
  %v48 = vld [vmem:[%s2 + $0x30] sm:$0xff]
  %v49 = vld [vmem:[%s2 + $0x38] sm:$0xff]
  %51 = vset.pattern.permute.xlu0 0
  %52 = vperm.xlu0 %51, %v42
  %v53 = vpop.permute.xlu0 %52
  %56 = vset.pattern.permute.xlu0 0
  %57 = vperm.xlu0 %56, %v43
  %v58 = vpop.permute.xlu0 %57
  %61 = vset.pattern.permute.xlu0 0
  %62 = vperm.xlu0 %61, %v44
  %v63 = vpop.permute.xlu0 %62
  %66 = vset.pattern.permute.xlu0 0
  %67 = vperm.xlu0 %66, %v45
  %v68 = vpop.permute.xlu0 %67
  %71 = vset.pattern.permute.xlu0 0
  %72 = vperm.xlu0 %71, %v46
  %v73 = vpop.permute.xlu0 %72
  %76 = vset.pattern.permute.xlu0 0
  %77 = vperm.xlu0 %76, %v47
  %v78 = vpop.permute.xlu0 %77
  %81 = vset.pattern.permute.xlu0 0
  %82 = vperm.xlu0 %81, %v48
  %v83 = vpop.permute.xlu0 %82
  %86 = vset.pattern.permute.xlu0 0
  %87 = vperm.xlu0 %86, %v49
  %v88 = vpop.permute.xlu0 %87
  %v98 = vunpack.c.l.b16 %v33
  %v99 = vunpack.c.l.b16 %v34
  %v100 = vunpack.c.l.b16 %v35
  %v101 = vunpack.c.l.b16 %v36
  %v102 = vunpack.c.l.b16 %v37
  %v103 = vunpack.c.l.b16 %v38
  %v104 = vunpack.c.l.b16 %v39
  %v105 = vunpack.c.l.b16 %v40
  %v106 = vpack.c.b16 %v99, %v98
  %v107 = vpack.c.b16 %v101, %v100
  %v108 = vpack.c.b16 %v103, %v102
  %v109 = vpack.c.b16 %v105, %v104
  %vm110 = vcmask 48128
  %v112 = vsel %vm110, %v106, 0
  %v115 = vsel %vm110, %v107, 0
  %v118 = vsel %vm110, %v108, 0
  %v121 = vsel %vm110, %v109, 0
  %vm123 = vcmask 1042432
  %v125 = vsel %vm123, %v41, 0
  %127 = vmatprep.subr.bf16.mxu0 0
  %128 = vmatpush1.bf16.msra.mxu0 %v125
  %129 = vmatprep.subr.bf16.mxu0 0
  %130 = vmatpush1.bf16.msra.mxu0 0
  %131 = vmatprep.subr.bf16.mxu0 0
  %132 = vmatpush1.bf16.msra.mxu0 0
  %133 = vmatprep.subr.bf16.mxu0 0
  %134 = vmatpush1.bf16.msra.mxu0 0
  %135 = vmatprep.subr.bf16.mxu0 0
  %136 = vmatpush1.bf16.msra.mxu0 0
  %137 = vmatprep.subr.bf16.mxu0 0
  %138 = vmatpush1.bf16.msra.mxu0 0
  %139 = vmatprep.subr.bf16.mxu0 0
  %140 = vmatpush1.bf16.msra.mxu0 0
  %141 = vmatprep.subr.bf16.mxu0 0
  %142 = vmatpush1.bf16.msra.mxu0 0
  %143 = vmatprep.subr.bf16.mxu0 0
  %144 = vmatpush1.bf16.msra.mxu0 0
  %145 = vmatprep.subr.bf16.mxu0 0
  %146 = vmatpush1.bf16.msra.mxu0 0
  %147 = vmatprep.subr.bf16.mxu0 0
  %148 = vmatpush1.bf16.msra.mxu0 0
  %149 = vmatprep.subr.bf16.mxu0 0
  %150 = vmatpush1.bf16.msra.mxu0 0
  %151 = vmatprep.subr.bf16.mxu0 0
  %152 = vmatpush1.bf16.msra.mxu0 0
  %153 = vmatprep.subr.bf16.mxu0 0
  %154 = vmatpush1.bf16.msra.mxu0 0
  %155 = vmatprep.subr.bf16.mxu0 0
  %156 = vmatpush1.bf16.msra.mxu0 0
  %157 = vmatprep.subr.bf16.mxu0 0
  %158 = vmatpush1.bf16.msra.mxu0 0
  %159 = vmatprep.mubr.bf16.mxu0 0
  %160 = vmatmul.mubr.bf16.gmra.mrb[0].mxu0 %v112
  %v161 = vpop.f32.mrb[0].mxu0
  %v162 = vadd.f32 %v53, %v161
  %v163 = vpop.f32.mrb[0].mxu0
  %v164 = vpop.f32.mrb[0].mxu0
  %v165 = vadd.f32 %v58, %v164
  %v166 = vpop.f32.mrb[0].mxu0
  %167 = vmatprep.mubr.bf16.mxu0 0
  %168 = vmatmul.mubr.bf16.gmra.mrb[0].mxu0 %v115
  %v169 = vpop.f32.mrb[0].mxu0
  %v170 = vadd.f32 %v63, %v169
  %v171 = vpop.f32.mrb[0].mxu0
  %v172 = vpop.f32.mrb[0].mxu0
  %v173 = vadd.f32 %v68, %v172
  %v174 = vpop.f32.mrb[0].mxu0
  %175 = vmatprep.mubr.bf16.mxu0 0
  %176 = vmatmul.mubr.bf16.gmra.mrb[0].mxu0 %v118
  %v177 = vpop.f32.mrb[0].mxu0
  %v178 = vadd.f32 %v73, %v177
  %v179 = vpop.f32.mrb[0].mxu0
  %v180 = vpop.f32.mrb[0].mxu0
  %v181 = vadd.f32 %v78, %v180
  %v182 = vpop.f32.mrb[0].mxu0
  %183 = vmatprep.mubr.bf16.mxu0 0
  %184 = vmatmul.mubr.bf16.gmra.mrb[0].mxu0 %v121
  %v185 = vpop.f32.mrb[0].mxu0
  %v186 = vadd.f32 %v83, %v185
  %v187 = vpop.f32.mrb[0].mxu0
  %v188 = vpop.f32.mrb[0].mxu0
  %v189 = vadd.f32 %v88, %v188
  %v190 = vpop.f32.mrb[0].mxu0
  %191 = vdwg.mxu0
  %v192 = vmax.f32 %v162, 0.0
  %v193 = vmax.f32 %v165, 0.0
  %v194 = vmax.f32 %v170, 0.0
  %v195 = vmax.f32 %v173, 0.0
  %v196 = vmax.f32 %v178, 0.0
  %v197 = vmax.f32 %v181, 0.0
  %v198 = vmax.f32 %v186, 0.0
  %v199 = vmax.f32 %v189, 0.0
  %v200 = vld [vmem:[%s3] sm:$0xf]
  %v201 = vld [vmem:[%s3 + $0x4] sm:$0xf]
  %v202 = vld [vmem:[%s3 + $0x8] sm:$0xf]
  %v203 = vld [vmem:[%s3 + $0xc] sm:$0xf]
  %v204 = vld [vmem:[%s3 + $0x10] sm:$0xf]
  %v205 = vld [vmem:[%s3 + $0x14] sm:$0xf]
  %v206 = vld [vmem:[%s3 + $0x18] sm:$0xf]
  %v207 = vld [vmem:[%s3 + $0x1c] sm:$0xf]
  %v208 = vpack.c.bf16 %v193, %v192
  %v209 = vpack.c.bf16 %v195, %v194
  %v210 = vpack.c.bf16 %v197, %v196
  %v211 = vpack.c.bf16 %v199, %v198
  %v212 = vld [vmem:[%s4] sm:$0xff]
  %v213 = vld [vmem:[%s4 + $0x8] sm:$0xff]
  %v214 = vld [vmem:[%s4 + $0x10] sm:$0xff]
  %v215 = vld [vmem:[%s4 + $0x18] sm:$0xff]
  %v216 = vld [vmem:[%s4 + $0x20] sm:$0xff]
  %v217 = vld [vmem:[%s4 + $0x28] sm:$0xff]
  %v218 = vld [vmem:[%s4 + $0x30] sm:$0xff]
  %v219 = vld [vmem:[%s4 + $0x38] sm:$0xff]
  %221 = vset.pattern.permute.xlu0 0
  %222 = vperm.xlu0 %221, %v212
  %v223 = vpop.permute.xlu0 %222
  %226 = vset.pattern.permute.xlu0 0
  %227 = vperm.xlu0 %226, %v213
  %v228 = vpop.permute.xlu0 %227
  %231 = vset.pattern.permute.xlu0 0
  %232 = vperm.xlu0 %231, %v214
  %v233 = vpop.permute.xlu0 %232
  %236 = vset.pattern.permute.xlu0 0
  %237 = vperm.xlu0 %236, %v215
  %v238 = vpop.permute.xlu0 %237
  %241 = vset.pattern.permute.xlu0 0
  %242 = vperm.xlu0 %241, %v216
  %v243 = vpop.permute.xlu0 %242
  %246 = vset.pattern.permute.xlu0 0
  %247 = vperm.xlu0 %246, %v217
  %v248 = vpop.permute.xlu0 %247
  %251 = vset.pattern.permute.xlu0 0
  %252 = vperm.xlu0 %251, %v218
  %v253 = vpop.permute.xlu0 %252
  %256 = vset.pattern.permute.xlu0 0
  %257 = vperm.xlu0 %256, %v219
  %v258 = vpop.permute.xlu0 %257
  %v268 = vunpack.c.l.b16 %v200
  %v269 = vunpack.c.l.b16 %v201
  %v270 = vunpack.c.l.b16 %v202
  %v271 = vunpack.c.l.b16 %v203
  %v272 = vunpack.c.l.b16 %v204
  %v273 = vunpack.c.l.b16 %v205
  %v274 = vunpack.c.l.b16 %v206
  %v275 = vunpack.c.l.b16 %v207
  %v276 = vpack.c.b16 %v269, %v268
  %v277 = vpack.c.b16 %v271, %v270
  %v278 = vpack.c.b16 %v273, %v272
  %v279 = vpack.c.b16 %v275, %v274
  %vm280 = vcmask 523264
  %v282 = vsel %vm280, %v276, 0
  %v285 = vsel %vm280, %v277, 0
  %v288 = vsel %vm280, %v278, 0
  %v291 = vsel %vm280, %v279, 0
  %293 = vmatprep.subr.bf16.mxu0 0
  %294 = vmatpush1.bf16.msra.mxu0 %v208
  %295 = vmatprep.subr.bf16.mxu0 0
  %296 = vmatpush1.bf16.msra.mxu0 %v209
  %297 = vmatprep.subr.bf16.mxu0 0
  %298 = vmatpush1.bf16.msra.mxu0 %v210
  %299 = vmatprep.subr.bf16.mxu0 0
  %300 = vmatpush1.bf16.msra.mxu0 %v211
  %301 = vmatprep.subr.bf16.mxu0 0
  %302 = vmatpush1.bf16.msra.mxu0 0
  %303 = vmatprep.subr.bf16.mxu0 0
  %304 = vmatpush1.bf16.msra.mxu0 0
  %305 = vmatprep.subr.bf16.mxu0 0
  %306 = vmatpush1.bf16.msra.mxu0 0
  %307 = vmatprep.subr.bf16.mxu0 0
  %308 = vmatpush1.bf16.msra.mxu0 0
  %309 = vmatprep.subr.bf16.mxu0 0
  %310 = vmatpush1.bf16.msra.mxu0 0
  %311 = vmatprep.subr.bf16.mxu0 0
  %312 = vmatpush1.bf16.msra.mxu0 0
  %313 = vmatprep.subr.bf16.mxu0 0
  %314 = vmatpush1.bf16.msra.mxu0 0
  %315 = vmatprep.subr.bf16.mxu0 0
  %316 = vmatpush1.bf16.msra.mxu0 0
  %317 = vmatprep.subr.bf16.mxu0 0
  %318 = vmatpush1.bf16.msra.mxu0 0
  %319 = vmatprep.subr.bf16.mxu0 0
  %320 = vmatpush1.bf16.msra.mxu0 0
  %321 = vmatprep.subr.bf16.mxu0 0
  %322 = vmatpush1.bf16.msra.mxu0 0
  %323 = vmatprep.subr.bf16.mxu0 0
  %324 = vmatpush1.bf16.msra.mxu0 0
  %325 = vmatprep.mubr.bf16.mxu0 0
  %326 = vmatmul.mubr.bf16.gmra.mrb[0].mxu0 %v282
  %v327 = vpop.f32.mrb[0].mxu0
  %v328 = vadd.f32 %v223, %v327
  %v329 = vpop.f32.mrb[0].mxu0
  %v330 = vpop.f32.mrb[0].mxu0
  %v331 = vadd.f32 %v228, %v330
  %v332 = vpop.f32.mrb[0].mxu0
  %333 = vmatprep.mubr.bf16.mxu0 0
  %334 = vmatmul.mubr.bf16.gmra.mrb[0].mxu0 %v285
  %v335 = vpop.f32.mrb[0].mxu0
  %v336 = vadd.f32 %v233, %v335
  %v337 = vpop.f32.mrb[0].mxu0
  %v338 = vpop.f32.mrb[0].mxu0
  %v339 = vadd.f32 %v238, %v338
  %v340 = vpop.f32.mrb[0].mxu0
  %341 = vmatprep.mubr.bf16.mxu0 0
  %342 = vmatmul.mubr.bf16.gmra.mrb[0].mxu0 %v288
  %v343 = vpop.f32.mrb[0].mxu0
  %v344 = vadd.f32 %v243, %v343
  %v345 = vpop.f32.mrb[0].mxu0
  %v346 = vpop.f32.mrb[0].mxu0
  %v347 = vadd.f32 %v248, %v346
  %v348 = vpop.f32.mrb[0].mxu0
  %349 = vmatprep.mubr.bf16.mxu0 0
  %350 = vmatmul.mubr.bf16.gmra.mrb[0].mxu0 %v291
  %v351 = vpop.f32.mrb[0].mxu0
  %v352 = vadd.f32 %v253, %v351
  %v353 = vpop.f32.mrb[0].mxu0
  %v354 = vpop.f32.mrb[0].mxu0
  %v355 = vadd.f32 %v258, %v354
  %v356 = vpop.f32.mrb[0].mxu0
  %357 = vdwg.mxu0
  %v358 = vmax.f32 %v328, 0.0
  %v359 = vmax.f32 %v331, 0.0
  %v360 = vmax.f32 %v336, 0.0
  %v361 = vmax.f32 %v339, 0.0
  %v362 = vmax.f32 %v344, 0.0
  %v363 = vmax.f32 %v347, 0.0
  %v364 = vmax.f32 %v352, 0.0
  %v365 = vmax.f32 %v355, 0.0
  %v366 = vld [vmem:[%s5] sm:$0xf]
  %v367 = vld [vmem:[%s5 + $0x4] sm:$0xf]
  %v368 = vld [vmem:[%s5 + $0x8] sm:$0xf]
  %v369 = vld [vmem:[%s5 + $0xc] sm:$0xf]
  %v370 = vld [vmem:[%s5 + $0x10] sm:$0xf]
  %v371 = vld [vmem:[%s5 + $0x14] sm:$0xf]
  %v372 = vld [vmem:[%s5 + $0x18] sm:$0xf]
  %v373 = vld [vmem:[%s5 + $0x1c] sm:$0xf]
  %v374 = vpack.c.bf16 %v359, %v358
  %v375 = vpack.c.bf16 %v361, %v360
  %v376 = vpack.c.bf16 %v363, %v362
  %v377 = vpack.c.bf16 %v365, %v364
  %v378 = vld [vmem:[%s6] sm:$0xff]
  %v379 = vld [vmem:[%s6 + $0x8] sm:$0xff]
  %v380 = vld [vmem:[%s6 + $0x10] sm:$0xff]
  %v381 = vld [vmem:[%s6 + $0x18] sm:$0xff]
  %v382 = vld [vmem:[%s6 + $0x20] sm:$0xff]
  %v383 = vld [vmem:[%s6 + $0x28] sm:$0xff]
  %v384 = vld [vmem:[%s6 + $0x30] sm:$0xff]
  %v385 = vld [vmem:[%s6 + $0x38] sm:$0xff]
  %387 = vset.pattern.permute.xlu0 0
  %388 = vperm.xlu0 %387, %v378
  %v389 = vpop.permute.xlu0 %388
  %392 = vset.pattern.permute.xlu0 0
  %393 = vperm.xlu0 %392, %v379
  %v394 = vpop.permute.xlu0 %393
  %397 = vset.pattern.permute.xlu0 0
  %398 = vperm.xlu0 %397, %v380
  %v399 = vpop.permute.xlu0 %398
  %402 = vset.pattern.permute.xlu0 0
  %403 = vperm.xlu0 %402, %v381
  %v404 = vpop.permute.xlu0 %403
  %407 = vset.pattern.permute.xlu0 0
  %408 = vperm.xlu0 %407, %v382
  %v409 = vpop.permute.xlu0 %408
  %412 = vset.pattern.permute.xlu0 0
  %413 = vperm.xlu0 %412, %v383
  %v414 = vpop.permute.xlu0 %413
  %417 = vset.pattern.permute.xlu0 0
  %418 = vperm.xlu0 %417, %v384
  %v419 = vpop.permute.xlu0 %418
  %422 = vset.pattern.permute.xlu0 0
  %423 = vperm.xlu0 %422, %v385
  %v424 = vpop.permute.xlu0 %423
  %v434 = vunpack.c.l.b16 %v366
  %v435 = vunpack.c.l.b16 %v367
  %v436 = vunpack.c.l.b16 %v368
  %v437 = vunpack.c.l.b16 %v369
  %v438 = vunpack.c.l.b16 %v370
  %v439 = vunpack.c.l.b16 %v371
  %v440 = vunpack.c.l.b16 %v372
  %v441 = vunpack.c.l.b16 %v373
  %v442 = vpack.c.b16 %v435, %v434
  %v443 = vpack.c.b16 %v437, %v436
  %v444 = vpack.c.b16 %v439, %v438
  %v445 = vpack.c.b16 %v441, %v440
  %v447 = vsel %vm280, %v442, 0
  %v450 = vsel %vm280, %v443, 0
  %v453 = vsel %vm280, %v444, 0
  %v456 = vsel %vm280, %v445, 0
  %458 = vmatprep.subr.bf16.mxu0 0
  %459 = vmatpush1.bf16.msra.mxu0 %v374
  %460 = vmatprep.subr.bf16.mxu0 0
  %461 = vmatpush1.bf16.msra.mxu0 %v375
  %462 = vmatprep.subr.bf16.mxu0 0
  %463 = vmatpush1.bf16.msra.mxu0 %v376
  %464 = vmatprep.subr.bf16.mxu0 0
  %465 = vmatpush1.bf16.msra.mxu0 %v377
  %466 = vmatprep.subr.bf16.mxu0 0
  %467 = vmatpush1.bf16.msra.mxu0 0
  %468 = vmatprep.subr.bf16.mxu0 0
  %469 = vmatpush1.bf16.msra.mxu0 0
  %470 = vmatprep.subr.bf16.mxu0 0
  %471 = vmatpush1.bf16.msra.mxu0 0
  %472 = vmatprep.subr.bf16.mxu0 0
  %473 = vmatpush1.bf16.msra.mxu0 0
  %474 = vmatprep.subr.bf16.mxu0 0
  %475 = vmatpush1.bf16.msra.mxu0 0
  %476 = vmatprep.subr.bf16.mxu0 0
  %477 = vmatpush1.bf16.msra.mxu0 0
  %478 = vmatprep.subr.bf16.mxu0 0
  %479 = vmatpush1.bf16.msra.mxu0 0
  %480 = vmatprep.subr.bf16.mxu0 0
  %481 = vmatpush1.bf16.msra.mxu0 0
  %482 = vmatprep.subr.bf16.mxu0 0
  %483 = vmatpush1.bf16.msra.mxu0 0
  %484 = vmatprep.subr.bf16.mxu0 0
  %485 = vmatpush1.bf16.msra.mxu0 0
  %486 = vmatprep.subr.bf16.mxu0 0
  %487 = vmatpush1.bf16.msra.mxu0 0
  %488 = vmatprep.subr.bf16.mxu0 0
  %489 = vmatpush1.bf16.msra.mxu0 0
  %490 = vmatprep.mubr.bf16.mxu0 0
  %491 = vmatmul.mubr.bf16.gmra.mrb[0].mxu0 %v447
  %v492 = vpop.f32.mrb[0].mxu0
  %v493 = vadd.f32 %v389, %v492
  %v494 = vpop.f32.mrb[0].mxu0
  %v495 = vpop.f32.mrb[0].mxu0
  %v496 = vadd.f32 %v394, %v495
  %v497 = vpop.f32.mrb[0].mxu0
  %498 = vmatprep.mubr.bf16.mxu0 0
  %499 = vmatmul.mubr.bf16.gmra.mrb[0].mxu0 %v450
  %v500 = vpop.f32.mrb[0].mxu0
  %v501 = vadd.f32 %v399, %v500
  %v502 = vpop.f32.mrb[0].mxu0
  %v503 = vpop.f32.mrb[0].mxu0
  %v504 = vadd.f32 %v404, %v503
  %v505 = vpop.f32.mrb[0].mxu0
  %506 = vmatprep.mubr.bf16.mxu0 0
  %507 = vmatmul.mubr.bf16.gmra.mrb[0].mxu0 %v453
  %v508 = vpop.f32.mrb[0].mxu0
  %v509 = vadd.f32 %v409, %v508
  %v510 = vpop.f32.mrb[0].mxu0
  %v511 = vpop.f32.mrb[0].mxu0
  %v512 = vadd.f32 %v414, %v511
  %v513 = vpop.f32.mrb[0].mxu0
  %514 = vmatprep.mubr.bf16.mxu0 0
  %515 = vmatmul.mubr.bf16.gmra.mrb[0].mxu0 %v456
  %v516 = vpop.f32.mrb[0].mxu0
  %v517 = vadd.f32 %v419, %v516
  %v518 = vpop.f32.mrb[0].mxu0
  %v519 = vpop.f32.mrb[0].mxu0
  %v520 = vadd.f32 %v424, %v519
  %v521 = vpop.f32.mrb[0].mxu0
  %522 = vdwg.mxu0
  %v523 = vmax.f32 %v493, 0.0
  %v524 = vmax.f32 %v496, 0.0
  %v525 = vmax.f32 %v501, 0.0
  %v526 = vmax.f32 %v504, 0.0
  %v527 = vmax.f32 %v509, 0.0
  %v528 = vmax.f32 %v512, 0.0
  %v529 = vmax.f32 %v517, 0.0
  %v530 = vmax.f32 %v520, 0.0
  %v531 = vld [vmem:[%s7] sm:$0x3]
  %v532 = vpack.c.bf16 %v524, %v523
  %v533 = vpack.c.bf16 %v526, %v525
  %v534 = vpack.c.bf16 %v528, %v527
  %v535 = vpack.c.bf16 %v530, %v529
  %v536 = vld [vmem:[%s8] sm:$0xf]
  %538 = vset.pattern.permute.xlu0 0
  %539 = vperm.xlu0 %538, %v536
  %v540 = vpop.permute.xlu0 %539
  %v543 = vsel %vm280, %v531, 0
  %545 = vmatprep.subr.bf16.mxu0 0
  %546 = vmatpush1.bf16.msra.mxu0 %v532
  %547 = vmatprep.subr.bf16.mxu0 0
  %548 = vmatpush1.bf16.msra.mxu0 %v533
  %549 = vmatprep.subr.bf16.mxu0 0
  %550 = vmatpush1.bf16.msra.mxu0 %v534
  %551 = vmatprep.subr.bf16.mxu0 0
  %552 = vmatpush1.bf16.msra.mxu0 %v535
  %553 = vmatprep.subr.bf16.mxu0 0
  %554 = vmatpush1.bf16.msra.mxu0 0
  %555 = vmatprep.subr.bf16.mxu0 0
  %556 = vmatpush1.bf16.msra.mxu0 0
  %557 = vmatprep.subr.bf16.mxu0 0
  %558 = vmatpush1.bf16.msra.mxu0 0
  %559 = vmatprep.subr.bf16.mxu0 0
  %560 = vmatpush1.bf16.msra.mxu0 0
  %561 = vmatprep.subr.bf16.mxu0 0
  %562 = vmatpush1.bf16.msra.mxu0 0
  %563 = vmatprep.subr.bf16.mxu0 0
  %564 = vmatpush1.bf16.msra.mxu0 0
  %565 = vmatprep.subr.bf16.mxu0 0
  %566 = vmatpush1.bf16.msra.mxu0 0
  %567 = vmatprep.subr.bf16.mxu0 0
  %568 = vmatpush1.bf16.msra.mxu0 0
  %569 = vmatprep.subr.bf16.mxu0 0
  %570 = vmatpush1.bf16.msra.mxu0 0
  %571 = vmatprep.subr.bf16.mxu0 0
  %572 = vmatpush1.bf16.msra.mxu0 0
  %573 = vmatprep.subr.bf16.mxu0 0
  %574 = vmatpush1.bf16.msra.mxu0 0
  %575 = vmatprep.subr.bf16.mxu0 0
  %576 = vmatpush1.bf16.msra.mxu0 0
  %577 = vmatprep.mubr.bf16.mxu0 0
  %578 = vmatmul.mubr.bf16.gmra.mrb[0].mxu0 %v543
  %v579 = vpop.f32.mrb[0].mxu0
  %v580 = vadd.f32 %v540, %v579
  %v581 = vpop.f32.mrb[0].mxu0
  %v582 = vpop.f32.mrb[0].mxu0
  %v583 = vpop.f32.mrb[0].mxu0
  %584 = vdwg.mxu0
  %585 = vst [vmem:[%s9] sm:$0xf] %v580
  // Predicated region
  $region38: #{residual_net_forward.1} parent=0 // pred_check
    _
  $region39: #{residual_net_forward.1} parent=0 // pred_check_branch
    %587 = sbr.rel (0) target = $region41
  $region40: #{residual_net_forward.1} parent=0 // pred_region
    _
  $region41: #{residual_net_forward.1} parent=0 // pred_fallthru
    _
  // Predicated region
  $region42: #{residual_net_forward.1} parent=0 // pred_check
    _
  $region43: #{residual_net_forward.1} parent=0 // pred_check_branch
    %589 = sbr.rel (0) target = $region45
  $region44: #{residual_net_forward.1} parent=0 // pred_region
    _
  $region45: #{residual_net_forward.1} parent=0 // pred_fallthru
    _

</llo_original>
